<compile_context>
chip_gen: v6e
topology: v6e:2x2x1
jax: 0.10.0
libtpu: 0.0.40
codegen_flags: <defaults>
</compile_context>

<pallas_src>
import functools

import jax
import jax.numpy as jnp
from jax.experimental import pallas as pl
from jax.experimental.pallas import tpu as pltpu

GAMMA = 2.0          # hardcoded (original module never stored self.gamma)
IGNORE_INDEX = 255
_LANES = 128


def _focal_loss_kernel(logits_ref, target_ref, out_ref, acc_ref, *,
                       C, R, tile_rows, tiles_per_chunk, mask_rows):
    p = pl.program_id(2)

    @pl.when(p == 0)
    def _():
        acc_ref[...] = jnp.zeros_like(acc_ref)

    t = target_ref[0]                                     # (TR, 128) int32

    if mask_rows:
        # Tail tile / phantom tile: rows with global index >= R are garbage
        # (partial block reads) -> treat them as ignored.
        g = pl.program_id(1) * tiles_per_chunk + p        # un-clamped tile id
        row = g * tile_rows + jax.lax.broadcasted_iota(jnp.int32, t.shape, 0)
        valid = jnp.logical_and(t != IGNORE_INDEX, row < R)
    else:
        valid = t != IGNORE_INDEX
    # NOTE: labels outside [0, C) other than IGNORE_INDEX yield x_t == 0 and
    # are still counted as "valid" (PyTorch would raise on such data).

    # ---- fused class loop: no (C, TR, 128) temporaries are materialized ----
    # pass 1: per-pixel max logit (numerical stability); per-slab cast so
    # bf16 inputs never get a blanket (C, TR, 128) f32 copy.
    m = logits_ref[0, 0].astype(jnp.float32)
    for c in range(1, C):
        m = jnp.maximum(m, logits_ref[0, c].astype(jnp.float32))

    # pass 2: running sum of exp(x_c - m) and one-hot gather of the target
    # logit (no dynamic gather on TPU).
    sumexp = jnp.zeros_like(m)
    x_t = jnp.zeros_like(m)
    for c in range(C):
        xc = logits_ref[0, c].astype(jnp.float32)
        sumexp = sumexp + jnp.exp(xc - m)
        x_t = jnp.where(t == c, xc, x_t)

    logpt = jnp.log(sumexp) + m - x_t                     # exact CE value
    e_t = jnp.exp(x_t - m)                                # unnormalized p_t
    # (sumexp - e_t) * rcp(sumexp) == 1 - pt, without 1/(1-pt) error blow-up;
    # approx reciprocal runs on the EUP slot.
    one_minus_pt = (sumexp - e_t) * pl.reciprocal(sumexp, approx=True)
    loss = one_minus_pt * one_minus_pt * logpt            # gamma == 2 -> square
    # Ignored / out-of-bounds pixels contribute exactly 0; the select also
    # kills any NaN/Inf coming from garbage rows of a partial tail block.
    acc_ref[...] += jnp.where(valid, loss, 0.0)

    @pl.when(p == pl.num_programs(2) - 1)
    def _():
        # Single cross-lane/sublane reduction per (image, chunk).
        out_ref[...] = jnp.sum(acc_ref[...]).reshape(1, 1, 1)


def _choose_tile_rows(C, R, logit_itemsize, max_tile_rows=None):
    """Pick pixel-tile height (rows of 128 pixels) and the scoped VMEM limit.

    Generation aware: request ~3/4 of physical VMEM as vmem_limit_bytes
    (96 MiB on v5e/v6e, 48 MiB on v7x's 64 MiB VMEM) and size the tile
    against roughly half of it (double-buffered inputs + in-kernel f32
    temporaries + the accumulator).
    """
    try:
        info = pltpu.get_tpu_info()
        vmem_cap = int(getattr(info, "vmem_capacity_bytes", 64 * 1024 * 1024))
    except Exception:   # no TPU info available -> conservative default
        vmem_cap = 64 * 1024 * 1024
    vmem_limit = (vmem_cap * 3) // 4
    tile_budget = vmem_limit // 2

    # Per pixel-row (128 lanes): 2x-buffered logits block + 2x-buffered int32
    # targets + f32 accumulator + ~12 live f32 row temporaries in the kernel.
    per_row = _LANES * (2 * C * logit_itemsize + 2 * 4 + 4 + 12 * 4)
    cap = max(8, min(1024, tile_budget // per_row))
    if max_tile_rows is not None:
        cap = max(1, min(cap, max_tile_rows))
    if R <= cap:
        return R, vmem_limit                 # whole image's rows in one tile
    cap8 = max(8, (cap // 8) * 8)
    d = cap8
    while d >= 8:                            # prefer a divisor of R: no tail tile
        if R % d == 0:
            return d, vmem_limit
        d -= 8
    return cap8, vmem_limit                  # tail tile is masked in-kernel


def batch_focal_loss(output_nchw, target_nhw, *, max_tile_rows=None):
    """output_nchw: (N, C, H, W) float logits; target_nhw: (N, H, W) int labels."""
    N, C, H, W = output_nchw.shape
    HW = H * W
    P = N * HW                               # mean over ALL pixels

    R = -(-HW // _LANES)                     # pixel rows of 128 lanes
    lane_pad = R * _LANES - HW

    # NCHW is already class-major: pure (free) reshapes, no transpose.
    logits = output_nchw.reshape(N, C, HW)
    target = target_nhw.reshape(N, HW).astype(jnp.int32)
    if lane_pad:
        # Only when H*W is not a multiple of 128 (rare for seg nets); pad is
        # < 128 pixels/image so the (R, 128) reshape exists.  Padded pixels
        # carry IGNORE_INDEX -> contribute 0; the mean divides by the true P.
        # TODO(synk): a flat lane-major layout could avoid even this copy.
        logits = jnp.pad(logits, ((0, 0), (0, 0), (0, lane_pad)))
        target = jnp.pad(target, ((0, 0), (0, lane_pad)),
                         constant_values=IGNORE_INDEX)
    logits = logits.reshape(N, C, R, _LANES)
    target = target.reshape(N, R, _LANES)

    tile_rows, vmem_limit = _choose_tile_rows(
        C, R, jnp.dtype(logits.dtype).itemsize, max_tile_rows)
    T = -(-R // tile_rows)                   # real row tiles per image

    # Small per-chip batch: split the pixel axis into parallel chunks so both
    # TensorCores on v7x get work; harmless on single-TC v5e/v6e.
    n_chunks = 1 if N >= 2 else min(2, T)
    tiles_per_chunk = -(-T // n_chunks)

    if n_chunks * tiles_per_chunk != T:
        # Clamp "phantom" tiles (past the last real tile) onto a real block;
        # their rows are masked off inside the kernel.
        def _row_block(c, p):
            return jnp.minimum(c * tiles_per_chunk + p, T - 1)
    else:
        def _row_block(c, p):
            return c * tiles_per_chunk + p

    mask_rows = bool(n_chunks * tiles_per_chunk * tile_rows > R)

    kernel = functools.partial(
        _focal_loss_kernel, C=C, R=R, tile_rows=tile_rows,
        tiles_per_chunk=tiles_per_chunk, mask_rows=mask_rows)

    partial_sums = pl.pallas_call(
        kernel,
        out_shape=jax.ShapeDtypeStruct((N * n_chunks, 1, 1), jnp.float32),
        grid_spec=pltpu.PrefetchScalarGridSpec(
            num_scalar_prefetch=0,
            grid=(N, n_chunks, tiles_per_chunk),
            in_specs=[
                pl.BlockSpec((1, C, tile_rows, _LANES),
                             lambda n, c, p: (n, 0, _row_block(c, p), 0)),
                pl.BlockSpec((1, tile_rows, _LANES),
                             lambda n, c, p: (n, _row_block(c, p), 0)),
            ],
            out_specs=pl.BlockSpec((1, 1, 1),
                                   lambda n, c, p: (n * n_chunks + c, 0, 0)),
            scratch_shapes=[pltpu.VMEM((tile_rows, _LANES), jnp.float32)],
        ),
        compiler_params=pltpu.CompilerParams(
            # batch & pixel-chunk axes parallel (both TCs on v7x), row-tile
            # axis is the sequential reduction axis.
            dimension_semantics=("parallel", "parallel", "arbitrary"),
            vmem_limit_bytes=int(vmem_limit)),
    )(logits, target)

    return jnp.sum(partial_sums) / float(P)   # mean over ALL pixels


def _reference(output_nchw, target_nhw):
    """Pure-JAX reference of the PyTorch forward, for a sanity check."""
    N, C, H, W = output_nchw.shape
    logits = jnp.transpose(output_nchw, (0, 2, 3, 1)).reshape(-1, C)
    t = target_nhw.reshape(-1).astype(jnp.int32)
    logp = jax.nn.log_softmax(logits.astype(jnp.float32), axis=-1)
    x_t = jnp.take_along_axis(logp, jnp.clip(t, 0, C - 1)[:, None], axis=-1)[:, 0]
    logpt = jnp.where(t != IGNORE_INDEX, -x_t, 0.0)
    pt = jnp.exp(-logpt)
    loss = (1.0 - pt) ** GAMMA * logpt
    return jnp.mean(loss)


if __name__ == "__main__":
    key = jax.random.PRNGKey(0)

    def _make(k, N, C, H, W, ignore_frac=0.1):
        k1, k2, k3 = jax.random.split(k, 3)
        out = jax.random.normal(k1, (N, C, H, W), dtype=jnp.float32)
        tgt = jax.random.randint(k2, (N, H, W), 0, C, dtype=jnp.int32)
        msk = jax.random.bernoulli(k3, ignore_frac, (N, H, W))
        return out, jnp.where(msk, IGNORE_INDEX, tgt)

    k1, k2, k3 = jax.random.split(key, 3)

    # Main case (module-like small shapes).
    out, tgt = _make(k1, 2, 4, 16, 16)
    got = jax.block_until_ready(batch_focal_loss(out, tgt))
    ref = jax.block_until_ready(_reference(out, tgt))
    assert jnp.allclose(got, ref, rtol=1e-2, atol=1e-6), (got, ref)

    # Exercises tail-tile masking, phantom-tile clamping and the 2-chunk
    # (dual-TensorCore) split path (N=1, R=20 rows, forced 8-row tiles).
    out, tgt = _make(k2, 1, 5, 20, 128)
    got = jax.block_until_ready(batch_focal_loss(out, tgt, max_tile_rows=8))
    ref = jax.block_until_ready(_reference(out, tgt))
    assert jnp.allclose(got, ref, rtol=1e-2, atol=1e-6), (got, ref)

    # Exercises H*W not a multiple of 128 (small lane pad, ignored pixels).
    out, tgt = _make(k3, 1, 3, 10, 10)
    got = jax.block_until_ready(batch_focal_loss(out, tgt))
    ref = jax.block_until_ready(_reference(out, tgt))
    assert jnp.allclose(got, ref, rtol=1e-2, atol=1e-6), (got, ref)

    print("KERNEL_OK")
</pallas_src>

<mosaic_0001>
module attributes {stable_mosaic.version = 11 : i64} {
  func.func @_focal_loss_kernel(%arg0: i32, %arg1: i32, %arg2: i32, %arg3: memref<1x4x2x128xf32, #tpu.memory_space<vmem>>, %arg4: memref<1x2x128xi32, #tpu.memory_space<vmem>>, %arg5: memref<1x1x1xf32, #tpu.memory_space<vmem>>, %arg6: memref<2x128xf32, #tpu.memory_space<vmem>>) attributes {dimension_semantics = [#tpu.dimension_semantics<parallel>, #tpu.dimension_semantics<parallel>, #tpu.dimension_semantics<arbitrary>], iteration_bounds = array<i64: 2, 1, 1>, scalar_prefetch = 0 : i64, scratch_operands = 1 : i64, tpu.core_type = #tpu.core_type<tc>, window_params = [{transform_indices = @transform_0, window_bounds = array<i64: 1, 4, 2, 128>}, {transform_indices = @transform_1, window_bounds = array<i64: 1, 2, 128>}, {transform_indices = @transform_2, window_bounds = array<i64: 1, 1, 1>}]} {
    %c0_i32 = arith.constant 0 : i32
    %0 = arith.cmpi eq, %arg2, %c0_i32 : i32
    %1 = arith.extui %0 : i1 to i32
    %c0_i32_0 = arith.constant 0 : i32
    %2 = arith.cmpi ne, %1, %c0_i32_0 : i32
    scf.if %2 {
      %cst_41 = arith.constant 0.000000e+00 : f32
      %70 = vector.broadcast %cst_41 : f32 to vector<2x128xf32>
      %c0_42 = arith.constant 0 : index
      %c0_43 = arith.constant 0 : index
      %71 = vector.load %arg6[%c0_42, %c0_43] : memref<2x128xf32, #tpu.memory_space<vmem>>, vector<2x128xf32>
      tpu.vector_store %arg6[%c0_42, %c0_43], %70 {strides = array<i32>} : memref<2x128xf32, #tpu.memory_space<vmem>>, vector<2x128xf32>,
    } else {
    }
    %c0 = arith.constant 0 : index
    %c0_1 = arith.constant 0 : index
    %c0_2 = arith.constant 0 : index
    %3 = vector.load %arg4[%c0, %c0_1, %c0_2] : memref<1x2x128xi32, #tpu.memory_space<vmem>>, vector<1x2x128xi32>
    %4 = vector.shape_cast %3 : vector<1x2x128xi32> to vector<2x128xi32>
    %c255_i32 = arith.constant 255 : i32
    %5 = vector.broadcast %c255_i32 : i32 to vector<2x128xi32>
    %6 = arith.cmpi ne, %4, %5 : vector<2x128xi32>
    %c0_3 = arith.constant 0 : index
    %c0_4 = arith.constant 0 : index
    %c0_5 = arith.constant 0 : index
    %c0_6 = arith.constant 0 : index
    %7 = vector.load %arg3[%c0_3, %c0_4, %c0_5, %c0_6] : memref<1x4x2x128xf32, #tpu.memory_space<vmem>>, vector<1x1x2x128xf32>
    %8 = vector.shape_cast %7 : vector<1x1x2x128xf32> to vector<2x128xf32>
    %c0_7 = arith.constant 0 : index
    %c1 = arith.constant 1 : index
    %c0_8 = arith.constant 0 : index
    %c0_9 = arith.constant 0 : index
    %9 = vector.load %arg3[%c0_7, %c1, %c0_8, %c0_9] : memref<1x4x2x128xf32, #tpu.memory_space<vmem>>, vector<1x1x2x128xf32>
    %10 = vector.shape_cast %9 : vector<1x1x2x128xf32> to vector<2x128xf32>
    %11 = arith.maximumf %8, %10 : vector<2x128xf32>
    %c0_10 = arith.constant 0 : index
    %c2 = arith.constant 2 : index
    %c0_11 = arith.constant 0 : index
    %c0_12 = arith.constant 0 : index
    %12 = vector.load %arg3[%c0_10, %c2, %c0_11, %c0_12] : memref<1x4x2x128xf32, #tpu.memory_space<vmem>>, vector<1x1x2x128xf32>
    %13 = vector.shape_cast %12 : vector<1x1x2x128xf32> to vector<2x128xf32>
    %14 = arith.maximumf %11, %13 : vector<2x128xf32>
    %c0_13 = arith.constant 0 : index
    %c3 = arith.constant 3 : index
    %c0_14 = arith.constant 0 : index
    %c0_15 = arith.constant 0 : index
    %15 = vector.load %arg3[%c0_13, %c3, %c0_14, %c0_15] : memref<1x4x2x128xf32, #tpu.memory_space<vmem>>, vector<1x1x2x128xf32>
    %16 = vector.shape_cast %15 : vector<1x1x2x128xf32> to vector<2x128xf32>
    %17 = arith.maximumf %14, %16 : vector<2x128xf32>
    %cst = arith.constant 0.000000e+00 : f32
    %18 = vector.broadcast %cst : f32 to vector<2x128xf32>
    %cst_16 = arith.constant 0.000000e+00 : f32
    %19 = vector.broadcast %cst_16 : f32 to vector<2x128xf32>
    %c0_17 = arith.constant 0 : index
    %c0_18 = arith.constant 0 : index
    %c0_19 = arith.constant 0 : index
    %c0_20 = arith.constant 0 : index
    %20 = vector.load %arg3[%c0_17, %c0_18, %c0_19, %c0_20] : memref<1x4x2x128xf32, #tpu.memory_space<vmem>>, vector<1x1x2x128xf32>
    %21 = vector.shape_cast %20 : vector<1x1x2x128xf32> to vector<2x128xf32>
    %22 = arith.subf %21, %17 : vector<2x128xf32>
    %23 = math.exp %22 : vector<2x128xf32>
    %24 = arith.addf %18, %23 : vector<2x128xf32>
    %c0_i32_21 = arith.constant 0 : i32
    %25 = vector.broadcast %c0_i32_21 : i32 to vector<2x128xi32>
    %26 = arith.cmpi eq, %4, %25 : vector<2x128xi32>
    %27 = arith.select %26, %21, %19 : vector<2x128xi1>, vector<2x128xf32>
    %c0_22 = arith.constant 0 : index
    %c1_23 = arith.constant 1 : index
    %c0_24 = arith.constant 0 : index
    %c0_25 = arith.constant 0 : index
    %28 = vector.load %arg3[%c0_22, %c1_23, %c0_24, %c0_25] : memref<1x4x2x128xf32, #tpu.memory_space<vmem>>, vector<1x1x2x128xf32>
    %29 = vector.shape_cast %28 : vector<1x1x2x128xf32> to vector<2x128xf32>
    %30 = arith.subf %29, %17 : vector<2x128xf32>
    %31 = math.exp %30 : vector<2x128xf32>
    %32 = arith.addf %24, %31 : vector<2x128xf32>
    %c1_i32 = arith.constant 1 : i32
    %33 = vector.broadcast %c1_i32 : i32 to vector<2x128xi32>
    %34 = arith.cmpi eq, %4, %33 : vector<2x128xi32>
    %35 = arith.select %34, %29, %27 : vector<2x128xi1>, vector<2x128xf32>
    %c0_26 = arith.constant 0 : index
    %c2_27 = arith.constant 2 : index
    %c0_28 = arith.constant 0 : index
    %c0_29 = arith.constant 0 : index
    %36 = vector.load %arg3[%c0_26, %c2_27, %c0_28, %c0_29] : memref<1x4x2x128xf32, #tpu.memory_space<vmem>>, vector<1x1x2x128xf32>
    %37 = vector.shape_cast %36 : vector<1x1x2x128xf32> to vector<2x128xf32>
    %38 = arith.subf %37, %17 : vector<2x128xf32>
    %39 = math.exp %38 : vector<2x128xf32>
    %40 = arith.addf %32, %39 : vector<2x128xf32>
    %c2_i32 = arith.constant 2 : i32
    %41 = vector.broadcast %c2_i32 : i32 to vector<2x128xi32>
    %42 = arith.cmpi eq, %4, %41 : vector<2x128xi32>
    %43 = arith.select %42, %37, %35 : vector<2x128xi1>, vector<2x128xf32>
    %c0_30 = arith.constant 0 : index
    %c3_31 = arith.constant 3 : index
    %c0_32 = arith.constant 0 : index
    %c0_33 = arith.constant 0 : index
    %44 = vector.load %arg3[%c0_30, %c3_31, %c0_32, %c0_33] : memref<1x4x2x128xf32, #tpu.memory_space<vmem>>, vector<1x1x2x128xf32>
    %45 = vector.shape_cast %44 : vector<1x1x2x128xf32> to vector<2x128xf32>
    %46 = arith.subf %45, %17 : vector<2x128xf32>
    %47 = math.exp %46 : vector<2x128xf32>
    %48 = arith.addf %40, %47 : vector<2x128xf32>
    %c3_i32 = arith.constant 3 : i32
    %49 = vector.broadcast %c3_i32 : i32 to vector<2x128xi32>
    %50 = arith.cmpi eq, %4, %49 : vector<2x128xi32>
    %51 = arith.select %50, %45, %43 : vector<2x128xi1>, vector<2x128xf32>
    %52 = math.log %48 : vector<2x128xf32>
    %53 = arith.addf %52, %17 : vector<2x128xf32>
    %54 = arith.subf %53, %51 : vector<2x128xf32>
    %55 = arith.subf %51, %17 : vector<2x128xf32>
    %56 = math.exp %55 : vector<2x128xf32>
    %57 = arith.subf %48, %56 : vector<2x128xf32>
    %58 = tpu.reciprocal %48 {approx = true} : vector<2x128xf32> -> vector<2x128xf32>
    %59 = arith.mulf %57, %58 : vector<2x128xf32>
    %60 = arith.mulf %59, %59 : vector<2x128xf32>
    %61 = arith.mulf %60, %54 : vector<2x128xf32>
    %c0_34 = arith.constant 0 : index
    %c0_35 = arith.constant 0 : index
    %62 = vector.load %arg6[%c0_34, %c0_35] : memref<2x128xf32, #tpu.memory_space<vmem>>, vector<2x128xf32>
    %cst_36 = arith.constant 0.000000e+00 : f32
    %63 = vector.broadcast %cst_36 : f32 to vector<2x128xf32>
    %64 = arith.select %6, %61, %63 : vector<2x128xi1>, vector<2x128xf32>
    %65 = arith.addf %62, %64 : vector<2x128xf32>
    %c0_37 = arith.constant 0 : index
    %c0_38 = arith.constant 0 : index
    %66 = vector.load %arg6[%c0_37, %c0_38] : memref<2x128xf32, #tpu.memory_space<vmem>>, vector<2x128xf32>
    tpu.vector_store %arg6[%c0_37, %c0_38], %65 {strides = array<i32>} : memref<2x128xf32, #tpu.memory_space<vmem>>, vector<2x128xf32>,
    %c0_i32_39 = arith.constant 0 : i32
    %67 = arith.cmpi eq, %arg2, %c0_i32_39 : i32
    %68 = arith.extui %67 : i1 to i32
    %c0_i32_40 = arith.constant 0 : i32
    %69 = arith.cmpi ne, %68, %c0_i32_40 : i32
    scf.if %69 {
      %c0_41 = arith.constant 0 : index
      %c0_42 = arith.constant 0 : index
      %70 = vector.load %arg6[%c0_41, %c0_42] : memref<2x128xf32, #tpu.memory_space<vmem>>, vector<2x128xf32>
      %71 = vector.shape_cast %70 : vector<2x128xf32> to vector<1x2x128xf32>
      %cst_43 = arith.constant dense<0.000000e+00> : vector<1xf32>
      %72 = vector.multi_reduction <add>, %71, %cst_43 [1, 2] : vector<1x2x128xf32> to vector<1xf32>
      %73 = vector.shape_cast %72 : vector<1xf32> to vector<1x1x1xf32>
      %74 = vector.extract %73[0, 0, 0] : f32 from vector<1x1x1xf32>
      %75 = vector.broadcast %74 : f32 to vector<1x1x1xf32>
      %c0_44 = arith.constant 0 : index
      %c0_45 = arith.constant 0 : index
      %c0_46 = arith.constant 0 : index
      %76 = vector.load %arg5[%c0_44, %c0_45, %c0_46] : memref<1x1x1xf32, #tpu.memory_space<vmem>>, vector<1x1x1xf32>
      tpu.vector_store %arg5[%c0_44, %c0_45, %c0_46], %75 {strides = array<i32>} : memref<1x1x1xf32, #tpu.memory_space<vmem>>, vector<1x1x1xf32>,
    } else {
    }
    return
  }
  func.func @transform_0(%arg0: i32, %arg1: i32, %arg2: i32) -> (i32, i32, i32, i32) {
    %c1_i32 = arith.constant 1 : i32
    %0 = arith.muli %arg1, %c1_i32 : i32
    %1 = arith.addi %0, %arg2 : i32
    %c0_i32 = arith.constant 0 : i32
    %c0_i32_0 = arith.constant 0 : i32
    %c0_i32_1 = arith.constant 0 : i32
    return %arg0, %c0_i32, %1, %c0_i32_0 : i32, i32, i32, i32
  }
  func.func @transform_1(%arg0: i32, %arg1: i32, %arg2: i32) -> (i32, i32, i32) {
    %c1_i32 = arith.constant 1 : i32
    %0 = arith.muli %arg1, %c1_i32 : i32
    %1 = arith.addi %0, %arg2 : i32
    %c0_i32 = arith.constant 0 : i32
    %c0_i32_0 = arith.constant 0 : i32
    return %arg0, %1, %c0_i32 : i32, i32, i32
  }
  func.func @transform_2(%arg0: i32, %arg1: i32, %arg2: i32) -> (i32, i32, i32) {
    %c1_i32 = arith.constant 1 : i32
    %0 = arith.muli %arg0, %c1_i32 : i32
    %1 = arith.addi %0, %arg1 : i32
    %c0_i32 = arith.constant 0 : i32
    %c0_i32_0 = arith.constant 0 : i32
    %c0_i32_1 = arith.constant 0 : i32
    return %1, %c0_i32, %c0_i32_0 : i32, i32, i32
  }
}

</mosaic_0001>

<llo_original>
// kernel: tpu_custom_call.1
$region0: #{tpu_custom_call.1}
  #allocation0 [shape = 'u32[]', space=smem, size = 0x4, offset = 0x4, fixed_abs, tag = 'smem constant byte address 0x4 - core index']
  #allocation1 [shape = 'u32[144,128]{1,0:T(1,128)}', space=vmem, size = 0x12000, scoped, tag = 'internal scratch']
  #allocation2 [shape = 'f32[2,128]{1,0:T(2,128)}', space=vmem, size = 0x400, scoped, tag = 'scratch operand']
  %s0 = inlined_call_operand.hbm [shape: f32[2,4,2,128], index: 0, kind: input, shape index: {}]
  %s1 = inlined_call_operand.hbm [shape: s32[2,2,128], index: 1, kind: input, shape index: {}]
  %s2 = inlined_call_operand.vmem [shape: f32[2,1,1], index: 2, kind: output, shape index: {}]
  %s3 = sld [smem:[#allocation0]]
  $region57: #{tpu_custom_call.1} parent=0
    _
  %s5 = ssub.s32 1, %s3
  %s6 = scalar_select 0, %s5, %s3
  $region1: #{tpu_custom_call.1} parent=0
    #allocation3 [shape = 'u8[8192]{0}', space=vmem, size = 0x2000, scoped, tag = 'input window, operand 0']
    #allocation4 [shape = 's32[2]{0}', space=sflag, size = 0x8, scoped, tag = 'scoped memory for tpu_custom_call.1']
    #allocation5 [shape = 'u8[2048]{0}', space=vmem, size = 0x800, scoped, tag = 'input window, operand 1']
    #allocation6 [shape = 's32[2]{0}', space=sflag, size = 0x8, scoped, tag = 'scoped memory for tpu_custom_call.1']
    %7 = vsyncpa [#allocation4], 0
    %s8 = scalar_lea.sflag [#allocation4], 1
    %9 = vsyncpa %s8, 0
    %10 = vsyncpa [#allocation6], 0
    %s11 = scalar_lea.sflag [#allocation6], 1
    %12 = vsyncpa %s11, 0
    loop: start=0, step=1, limit=4
    $region2: #{tpu_custom_call.1} parent=1 // loop_pre_header
      _
    $region3: #{tpu_custom_call.1} parent=1 // loop_header
      %s14 = sphi 0, %s18
      %p15 = scmp.ge.s32.totalorder %s14, 4
      %s21 = sphi 0, %s40
      %s22 = sphi 0, %s36
      %s23 = sphi 0, %s32
      %s24 = sphi 0, %s21
      %s25 = sphi 0, %s22
      %s26 = sphi 0, %s23
      %s27 = sphi 0, %s24
      %s28 = sphi 0, %s25
      %s29 = sphi 0, %s26
      %s47 = sphi 0, %s49
      %s50 = sphi 0, %s47
      %s51 = sphi 0, %s50
      %s67 = sphi 0, %s51
      %s77 = sphi 0, %s79
      %s80 = sphi 0, %s77
      %s81 = sphi 0, %s80
      %s97 = sphi 0, %s81
      %s105 = sphi 0, %s107
      %s108 = sphi 0, %s105
      %s109 = sphi 0, %s108
      %s125 = sphi 0, %s109
    $region4: #{tpu_custom_call.1} parent=1 // loop_header_branch
      %17 = sbr.rel (%p15) target = $region8
    $region5: #{tpu_custom_call.1} parent=1 // loop_body
      %s19 = ssub.s32 %s14, 1
      %s20 = ssub.s32 %s14, 2
      %s30 = sadd.s32 1, %s23
      %p31 = scmp.ge.s32.totalorder %s30, 1
      %s32 = scalar_select %p31, 0, %s30
      %s33 = sadd.s32 1, %s22
      %s34 = scalar_select %p31, %s33, %s22
      %p35 = scmp.ge.s32.totalorder %s34, 1
      %s36 = scalar_select %p35, 0, %s34
      %s37 = sadd.s32 1, %s21
      %s38 = scalar_select %p35, %s37, %s21
      %p39 = scmp.ge.s32.totalorder %s38, 2
      %s40 = scalar_select %p39, 0, %s38
      %s41 = sadd.s32 %s22, %s23
      %s42 = sadd.s32 %s36, %s32
      %s43 = ssub.s32 %s21, %s40
      %s44 = ssub.s32 %s41, %s42
      %s45 = sor.u32 %s43, %s44
      %p46 = scmp.eq.s32.totalorder %s45, 0
      %s48 = sadd.s32 %s47, 1
      %s49 = scalar_select %p46, %s47, %s48
      %p52 = pneg %p46
      %p53 = scmp.eq.s32.totalorder %s14, 1
      %p54 = por %p52, %p53
      %p55 = scmp.ne.s32.totalorder %s47, %s50
      %p56 = scmp.eq.s32.totalorder %s14, 0
      %p57 = por %p55, %p56
      %p58 = scmp.ne.s32.totalorder %s47, %s50
      %p59 = scmp.eq.s32.totalorder %s19, 1
      %p60 = por %p58, %p59
      %p61 = scmp.ne.s32.totalorder %s50, %s51
      %p62 = scmp.eq.s32.totalorder %s19, 0
      %p63 = por %p61, %p62
      %p64 = scmp.ne.s32.totalorder %s50, %s51
      %p65 = scmp.eq.s32.totalorder %s20, 1
      %p66 = por %p64, %p65
      %p68 = scmp.ne.s32.totalorder %s51, %s67
      %p69 = scmp.eq.s32.totalorder %s20, 0
      %p70 = por %p68, %p69
      %s71 = sadd.s32 %s22, %s23
      %s72 = sadd.s32 %s36, %s32
      %s73 = ssub.s32 %s21, %s40
      %s74 = ssub.s32 %s71, %s72
      %s75 = sor.u32 %s73, %s74
      %p76 = scmp.eq.s32.totalorder %s75, 0
      %s78 = sadd.s32 %s77, 1
      %s79 = scalar_select %p76, %s77, %s78
      %p82 = pneg %p76
      %p83 = scmp.eq.s32.totalorder %s14, 1
      %p84 = por %p82, %p83
      %p85 = scmp.ne.s32.totalorder %s77, %s80
      %p86 = scmp.eq.s32.totalorder %s14, 0
      %p87 = por %p85, %p86
      %p88 = scmp.ne.s32.totalorder %s77, %s80
      %p89 = scmp.eq.s32.totalorder %s19, 1
      %p90 = por %p88, %p89
      %p91 = scmp.ne.s32.totalorder %s80, %s81
      %p92 = scmp.eq.s32.totalorder %s19, 0
      %p93 = por %p91, %p92
      %p94 = scmp.ne.s32.totalorder %s80, %s81
      %p95 = scmp.eq.s32.totalorder %s20, 1
      %p96 = por %p94, %p95
      %p98 = scmp.ne.s32.totalorder %s81, %s97
      %p99 = scmp.eq.s32.totalorder %s20, 0
      %p100 = por %p98, %p99
      %s101 = sadd.s32 %s21, %s22
      %s102 = sadd.s32 %s40, %s36
      %s103 = ssub.s32 %s101, %s102
      %p104 = scmp.eq.s32.totalorder %s103, 0
      %s106 = sadd.s32 %s105, 1
      %s107 = scalar_select %p104, %s105, %s106
      %p110 = pneg %p104
      %p111 = scmp.eq.s32.totalorder %s14, 1
      %p112 = por %p110, %p111
      %p113 = scmp.ne.s32.totalorder %s105, %s108
      %p114 = scmp.eq.s32.totalorder %s14, 0
      %p115 = por %p113, %p114
      %p116 = scmp.ne.s32.totalorder %s105, %s108
      %p117 = scmp.eq.s32.totalorder %s19, 1
      %p118 = por %p116, %p117
      %p119 = scmp.ne.s32.totalorder %s108, %s109
      %p120 = scmp.eq.s32.totalorder %s19, 0
      %p121 = por %p119, %p120
      %p122 = scmp.ne.s32.totalorder %s108, %s109
      %p123 = scmp.eq.s32.totalorder %s20, 1
      %p124 = por %p122, %p123
      %p126 = scmp.ne.s32.totalorder %s109, %s125
      %p127 = scmp.eq.s32.totalorder %s20, 0
      %p128 = por %p126, %p127
      %p129 = scmp.le.s32.totalorder 1, %s14
      %p130 = scmp.lt.s32.totalorder %s14, 3
      %p131 = pnand %p129, %p130
      %p132 = pneg %p131
      // Predicated region
      $region9: #{tpu_custom_call.1} parent=5 // pred_check
        _
      $region10: #{tpu_custom_call.1} parent=5 // pred_check_branch
        %134 = sbr.rel (%p131) target = $region12
      $region11: #{tpu_custom_call.1} parent=5 // pred_region
        %s135 = ssub.s32 %s14, 1
      $region12: #{tpu_custom_call.1} parent=5 // pred_fallthru
        _
      %p136 = scmp.lt.s32.totalorder %s14, 2
      // Predicated region
      $region13: #{tpu_custom_call.1} parent=5 // pred_check
        %p137 = pneg %p136
      $region14: #{tpu_custom_call.1} parent=5 // pred_check_branch
        %139 = sbr.rel (%p137) target = $region16
      $region15: #{tpu_custom_call.1} parent=5 // pred_region
        // Predicated region
        $region17: #{tpu_custom_call.1} parent=15 // pred_check
          %p140 = pneg %p57
        $region18: #{tpu_custom_call.1} parent=15 // pred_check_branch
          %142 = sbr.rel (%p140) target = $region20
        $region19: #{tpu_custom_call.1} parent=15 // pred_region
          %s143 = sand.u32 %s47, 1
          %s144 = scalar_lea.sflag [#allocation4], %s143
          %s145 = sand.u32 %s47, 1
          %s146 = smul.addr %s145, 8
          %s147 = scalar_lea.vmem [#allocation3], %s146
          %s148 = sadd.s32 %s22, %s23
          %s150 = ssub.s32 128, 128
          %151 = vsyncadd %s144, %s150
          %s152 = smul.addr %s21, 4
          %s153 = sadd.s32 %s148, %s152
          %s154 = smul.addr %s153, 32
          %s155 = scalar_lea.hbm %s0, %s154
          %s156 = sshll.u32 %s147, 4
          %s157 = int_to_ptr.vmem [resolvable:$true] %s156
          %162 = dma.hbm_to_vmem [thread:$0]  %s155, 128, %s157, %s144, 32, 32, 2
        $region20: #{tpu_custom_call.1} parent=15 // pred_fallthru
          _
        // Predicated region
        $region21: #{tpu_custom_call.1} parent=15 // pred_check
          %p163 = pneg %p87
        $region22: #{tpu_custom_call.1} parent=15 // pred_check_branch
          %165 = sbr.rel (%p163) target = $region24
        $region23: #{tpu_custom_call.1} parent=15 // pred_region
          %s166 = sand.u32 %s77, 1
          %s167 = scalar_lea.sflag [#allocation6], %s166
          %s168 = sand.u32 %s77, 1
          %s169 = smul.addr %s168, 2
          %s170 = scalar_lea.vmem [#allocation5], %s169
          %s171 = sadd.s32 %s22, %s23
          %s173 = ssub.s32 32, 32
          %174 = vsyncadd %s167, %s173
          %s175 = sadd.s32 %s171, %s21
          %s176 = smul.addr %s175, 32
          %s177 = scalar_lea.hbm %s1, %s176
          %s179 = sshll.u32 %s170, 4
          %s180 = int_to_ptr.vmem [resolvable:$true] %s179
          %182 = dma.hbm_to_vmem [thread:$0]  %s177, 32, %s180, %s167
        $region24: #{tpu_custom_call.1} parent=15 // pred_fallthru
          _
      $region16: #{tpu_custom_call.1} parent=5 // pred_fallthru
        _
      %p183 = scmp.le.s32.totalorder 1, %s14
      %p184 = scmp.lt.s32.totalorder %s14, 3
      %p185 = pnand %p183, %p184
      %p186 = pneg %p185
      // Predicated region
      $region25: #{tpu_custom_call.1} parent=5 // pred_check
        _
      $region26: #{tpu_custom_call.1} parent=5 // pred_check_branch
        %188 = sbr.rel (%p185) target = $region28
      $region27: #{tpu_custom_call.1} parent=5 // pred_region
        %s189 = ssub.s32 %s14, 1
        %s190 = sand.u32 %s50, 1
        %s191 = scalar_lea.sflag [#allocation4], %s190
        %s192 = sand.u32 %s50, 1
        %s193 = smul.addr %s192, 8
        %s194 = scalar_lea.vmem [#allocation3], %s193
        // Predicated region
        $region29: #{tpu_custom_call.1} parent=27 // pred_check
          %p195 = pneg %p63
        $region30: #{tpu_custom_call.1} parent=27 // pred_check_branch
          %197 = sbr.rel (%p195) target = $region32
        $region31: #{tpu_custom_call.1} parent=27 // pred_region
          %198 = dma.done %s191, 128
        $region32: #{tpu_custom_call.1} parent=27 // pred_fallthru
          _
        %s199 = sand.u32 %s80, 1
        %s200 = scalar_lea.sflag [#allocation6], %s199
        %s201 = sand.u32 %s80, 1
        %s202 = smul.addr %s201, 2
        %s203 = scalar_lea.vmem [#allocation5], %s202
        // Predicated region
        $region33: #{tpu_custom_call.1} parent=27 // pred_check
          %p204 = pneg %p93
        $region34: #{tpu_custom_call.1} parent=27 // pred_check_branch
          %206 = sbr.rel (%p204) target = $region36
        $region35: #{tpu_custom_call.1} parent=27 // pred_region
          %207 = dma.done %s200, 32
        $region36: #{tpu_custom_call.1} parent=27 // pred_fallthru
          _
        %s208 = sand.u32 %s50, 1
        %s209 = scalar_lea.sflag [#allocation4], %s208
        %s210 = sand.u32 %s50, 1
        %s211 = smul.addr %s210, 8
        %s212 = scalar_lea.vmem [#allocation3], %s211
        %p213 = pneg %p63
        %p214 = pneg %p60
        %s215 = sand.u32 %s80, 1
        %s216 = scalar_lea.sflag [#allocation6], %s215
        %s217 = sand.u32 %s80, 1
        %s218 = smul.addr %s217, 2
        %s219 = scalar_lea.vmem [#allocation5], %s218
        %p220 = pneg %p93
        %p221 = pneg %p90
        %p222 = pneg %p121
        %p223 = pneg %p118
        %s224 = sadd.s32 %s24, %s25
        %p225 = scmp.lt.s32.totalorder %s224, 1
        %s226 = scalar_select %p225, %s224, 1
        %s227 = scalar_lea.vmem %s2, %s226
        %s228 = sadd.s32 %s25, %s26
        %s229 = sadd.s32 %s25, %s26
        %s230 = sadd.s32 %s24, %s25
        %p231 = scmp.lt.s32.totalorder %s230, 1
        %s232 = scalar_select %p231, %s230, 1
        %s233 = scalar_lea.vmem %s2, %s232
        %s234 = sadd.s32 %s24, %s25
        %p235 = scmp.eq.s32.totalorder %s26, 0
        // Predicated region
        $region37: #{tpu_custom_call.1} parent=27 // pred_check
          %p236 = pneg %p235
        $region38: #{tpu_custom_call.1} parent=27 // pred_check_branch
          %238 = sbr.rel (%p236) target = $region40
        $region39: #{tpu_custom_call.1} parent=27 // pred_region
          %239 = vst [vmem:[#allocation2] sm:$0x3] 0.0
        $region40: #{tpu_custom_call.1} parent=27 // pred_fallthru
          _
        %v240 = vld [vmem:[%s203] sm:$0x3]
        %vm241 = vcmp.ne.s32.totalorder %v240, 255
        %v242 = vld [vmem:[%s194] sm:$0x3]
        %s243 = scalar_lea.vmem %s194, 2 [#allocation3]
        %v244 = vld [vmem:[%s243] sm:$0x3]
        %v245 = vmax.f32 %v242, %v244
        %s246 = scalar_lea.vmem %s194, 4 [#allocation3]
        %v247 = vld [vmem:[%s246] sm:$0x3]
        %v248 = vmax.f32 %v245, %v247
        %s249 = scalar_lea.vmem %s194, 6 [#allocation3]
        %v250 = vld [vmem:[%s249] sm:$0x3]
        %v251 = vmax.f32 %v248, %v250
        %v252 = vsub.f32 %v242, %v251
        %v253 = vmul.f32 %v252, 1.442695
        %v254 = vpow.pop %v253
        %v255 = vadd.f32 %v254, 0.0
        %vm256 = vcmp.eq.s32.totalorder %v240, 0
        %v257 = vsel %vm256, %v242, 0.0
        %v258 = vsub.f32 %v244, %v251
        %v259 = vmul.f32 %v258, 1.442695
        %v260 = vpow.pop %v259
        %v261 = vadd.f32 %v255, %v260
        %vm262 = vcmp.eq.s32.totalorder %v240, 1
        %v263 = vsel %vm262, %v244, %v257
        %v264 = vsub.f32 %v247, %v251
        %v265 = vmul.f32 %v264, 1.442695
        %v266 = vpow.pop %v265
        %v267 = vadd.f32 %v261, %v266
        %vm268 = vcmp.eq.s32.totalorder %v240, 2
        %v269 = vsel %vm268, %v247, %v263
        %v270 = vsub.f32 %v250, %v251
        %v271 = vmul.f32 %v270, 1.442695
        %v272 = vpow.pop %v271
        %v273 = vadd.f32 %v267, %v272
        %vm274 = vcmp.eq.s32.totalorder %v240, 3
        %v275 = vsel %vm274, %v250, %v269
        %v276 = vlog2.pop %v273
        %v277 = vmul.f32 %v276, 0.6931472
        %v278 = vadd.f32 %v277, %v251
        %v279 = vsub.f32 %v278, %v275
        %v280 = vsub.f32 %v275, %v251
        %v281 = vmul.f32 %v280, 1.442695
        %v282 = vpow.pop %v281
        %v283 = vsub.f32 %v273, %v282
        %v284 = vrcp.pop %v273
        %v285 = vmul.f32 %v283, %v284
        %v286 = vmul.f32 %v285, %v285
        %v287 = vmul.f32 %v286, %v279
        %v288 = vld [vmem:[#allocation2] sm:$0x3]
        %v289 = vsel %vm241, %v287, 0.0
        %v290 = vadd.f32 %v288, %v289
        %291 = vst [vmem:[#allocation2] sm:$0x3] %v290
        // Predicated region
        $region41: #{tpu_custom_call.1} parent=27 // pred_check
          %p292 = pneg %p235
        $region42: #{tpu_custom_call.1} parent=27 // pred_check_branch
          %294 = sbr.rel (%p292) target = $region44
        $region43: #{tpu_custom_call.1} parent=27 // pred_region
          %v295 = vld [vmem:[#allocation2] sm:$0x3]
          %vm296 = vcmask 1041408
          %v297 = vsel %vm296, %v295, 0.0
          %298 = vadd.xlane.f32.xlu0 %v297
          %v299 = vpop.xlane.xlu0 %298
          %v300 = vrot.slane %v299, 4
          %v301 = vadd.f32 %v299, %v300
          %v302 = vrot.slane %v301, 2
          %v303 = vadd.f32 %v301, %v302
          %v304 = vrot.slane %v303, 1
          %v305 = vadd.f32 %v303, %v304
          %s306 = vtos %v305
          %v307 = vstv %s306
          %vm308 = vcmask 0
          %309 = vst.msk [vmem:[%s233] sm:$0x1] %vm308, %v307
        $region44: #{tpu_custom_call.1} parent=27 // pred_fallthru
          _
        %s310 = sadd.s32 %s24, %s25
        %p311 = scmp.lt.s32.totalorder %s310, 1
        %s312 = scalar_select %p311, %s310, 1
        %s313 = scalar_lea.vmem %s2, %s312
        // Predicated region
        $region45: #{tpu_custom_call.1} parent=27 // pred_check
          %p314 = pneg %p118
        $region46: #{tpu_custom_call.1} parent=27 // pred_check_branch
          %316 = sbr.rel (%p314) target = $region48
        $region47: #{tpu_custom_call.1} parent=27 // pred_region
          %s317 = sadd.s32 %s24, %s25
        $region48: #{tpu_custom_call.1} parent=27 // pred_fallthru
          _
      $region28: #{tpu_custom_call.1} parent=5 // pred_fallthru
        _
      %p318 = scmp.le.s32.totalorder 2, %s14
      // Predicated region
      $region49: #{tpu_custom_call.1} parent=5 // pred_check
        %p319 = pneg %p318
      $region50: #{tpu_custom_call.1} parent=5 // pred_check_branch
        %321 = sbr.rel (%p319) target = $region52
      $region51: #{tpu_custom_call.1} parent=5 // pred_region
        %s322 = ssub.s32 %s14, 2
        // Predicated region
        $region53: #{tpu_custom_call.1} parent=51 // pred_check
          %p323 = pneg %p124
        $region54: #{tpu_custom_call.1} parent=51 // pred_check_branch
          %325 = sbr.rel (%p323) target = $region56
        $region55: #{tpu_custom_call.1} parent=51 // pred_region
          %s326 = sadd.s32 %s27, %s28
          %p327 = scmp.lt.s32.totalorder %s326, 1
          %s328 = scalar_select %p327, %s326, 1
          %s329 = scalar_lea.vmem %s2, %s328
        $region56: #{tpu_custom_call.1} parent=51 // pred_fallthru
          _
      $region52: #{tpu_custom_call.1} parent=5 // pred_fallthru
        _
    $region6: #{tpu_custom_call.1} parent=1 // loop_footer
      %s18 = sadd.s32 1, %s14
    $region7: #{tpu_custom_call.1} parent=1 // loop_footer_branch
      %13 = sbr.rel target = $region3
    $region8: #{tpu_custom_call.1} parent=1 // loop_exit
      _
    %330 = vsyncpa [#allocation4], 1
    %s331 = scalar_lea.sflag [#allocation4], 1
    %332 = vsyncpa %s331, 1
    %333 = vsyncpa [#allocation6], 1
    %s334 = scalar_lea.sflag [#allocation6], 1
    %335 = vsyncpa %s334, 1

</llo_original>
